<compile_context>
chip_gen: v7x
topology: tpu7x:2x2x1
jax: 0.10.0
libtpu: 0.0.40
codegen_flags: <defaults>
</compile_context>

<pallas_src>
import math

import jax
import jax.numpy as jnp
from jax.experimental import pallas as pl
from jax.experimental.pallas import tpu as pltpu


def _make_concat_kernel(sizes):
    """Kernel copying each input block into its slice of the output block."""
    offsets = []
    off = 0
    for c in sizes:
        offsets.append(off)
        off += c

    def kernel(*refs):
        o_ref = refs[-1]
        for x_ref, start, c in zip(refs[:-1], offsets, sizes):
            # Static slice along an untiled major axis -> pure tile copies.
            o_ref[:, start:start + c] = x_ref[...]

    return kernel


def _pick_row_tile(rows, max_rows=128):
    """Largest row tile <= max_rows that divides `rows` and is a multiple of 8
    (or the full extent when `rows` is small / has no such divisor)."""
    if rows <= max_rows:
        return rows
    for t in range(max_rows, 7, -8):
        if rows % t == 0:
            return t
    return rows


def concat_forward(xs, dimension=1):
    """Equivalent of torch.cat(xs, dim=dimension) for same-dtype JAX arrays."""
    ndim = xs[0].ndim
    d = dimension % ndim
    base = xs[0].shape
    dtype = xs[0].dtype
    for x in xs:
        assert x.ndim == ndim and x.dtype == dtype
        assert x.shape[:d] == base[:d] and x.shape[d + 1:] == base[d + 1:]

    sizes = [int(x.shape[d]) for x in xs]
    ctot = sum(sizes)
    outer = math.prod(base[:d]) if d > 0 else 1
    inner = math.prod(base[d + 1:]) if d < ndim - 1 else 1

    kernel = _make_concat_kernel(sizes)

    if inner > 0 and inner % 128 == 0:
        # Lane-dense path: trailing dims are (row_tile, 128); concat axis is untiled.
        rows = inner // 128
        st = _pick_row_tile(rows)
        grid = (outer, rows // st)
        xs_v = [x.reshape(outer, c, rows, 128) for x, c in zip(xs, sizes)]
        in_specs = [
            pl.BlockSpec((1, c, st, 128), lambda o, s: (o, 0, s, 0))
            for c in sizes
        ]
        out_specs = pl.BlockSpec((1, ctot, st, 128), lambda o, s: (o, 0, s, 0))
        out_shape = jax.ShapeDtypeStruct((outer, ctot, rows, 128), dtype)
    else:
        # TODO(synk): pad `inner` to a multiple of 128 for a lane-dense layout when
        # the trailing dims are not 128-divisible; this fallback is correct but
        # uses the full (possibly narrow) inner extent as the lane axis.
        grid = (outer, 1)
        xs_v = [x.reshape(outer, c, inner) for x, c in zip(xs, sizes)]
        in_specs = [
            pl.BlockSpec((1, c, inner), lambda o, s: (o, 0, 0))
            for c in sizes
        ]
        out_specs = pl.BlockSpec((1, ctot, inner), lambda o, s: (o, 0, 0))
        out_shape = jax.ShapeDtypeStruct((outer, ctot, inner), dtype)

    out = pl.pallas_call(
        kernel,
        out_shape=out_shape,
        grid_spec=pltpu.PrefetchScalarGridSpec(
            num_scalar_prefetch=0,
            grid=grid,
            in_specs=in_specs,
            out_specs=out_specs,
        ),
        compiler_params=pltpu.CompilerParams(
            dimension_semantics=("parallel", "parallel"),
        ),
    )(*xs_v)

    return out.reshape(base[:d] + (ctot,) + base[d + 1:])


if __name__ == "__main__":
    # Concat(dimension=1) over three NCHW feature maps with different channel
    # counts (including non-multiples of 8 to exercise arbitrary offsets).
    B, H, W = 2, 16, 16
    channels = (4, 8, 6)

    key = jax.random.PRNGKey(0)
    keys = jax.random.split(key, len(channels))
    xs = [
        jax.random.normal(k, (B, c, H, W), dtype=jnp.float32)
        for k, c in zip(keys, channels)
    ]

    out = jax.block_until_ready(concat_forward(xs, dimension=1))
    ref = jax.block_until_ready(jnp.concatenate(xs, axis=1))

    assert out.shape == (B, sum(channels), H, W), out.shape
    assert bool(jnp.array_equal(out, ref)), float(jnp.max(jnp.abs(out - ref)))
    print("KERNEL_OK")
</pallas_src>

<mosaic_0001>
module attributes {stable_mosaic.version = 11 : i64} {
  func.func @kernel(%arg0: i32, %arg1: i32, %arg2: memref<1x4x2x128xf32, #tpu.memory_space<vmem>>, %arg3: memref<1x8x2x128xf32, #tpu.memory_space<vmem>>, %arg4: memref<1x6x2x128xf32, #tpu.memory_space<vmem>>, %arg5: memref<1x18x2x128xf32, #tpu.memory_space<vmem>>) attributes {dimension_semantics = [#tpu.dimension_semantics<parallel>, #tpu.dimension_semantics<parallel>], iteration_bounds = array<i64: 2, 1>, scalar_prefetch = 0 : i64, scratch_operands = 0 : i64, tpu.core_type = #tpu.core_type<tc>, window_params = [{transform_indices = @transform_0, window_bounds = array<i64: 1, 4, 2, 128>}, {transform_indices = @transform_1, window_bounds = array<i64: 1, 8, 2, 128>}, {transform_indices = @transform_2, window_bounds = array<i64: 1, 6, 2, 128>}, {transform_indices = @transform_3, window_bounds = array<i64: 1, 18, 2, 128>}]} {
    %c0 = arith.constant 0 : index
    %c0_0 = arith.constant 0 : index
    %c0_1 = arith.constant 0 : index
    %c0_2 = arith.constant 0 : index
    %0 = vector.load %arg2[%c0, %c0_0, %c0_1, %c0_2] : memref<1x4x2x128xf32, #tpu.memory_space<vmem>>, vector<1x4x2x128xf32>
    %c0_3 = arith.constant 0 : index
    %c0_4 = arith.constant 0 : index
    %c0_5 = arith.constant 0 : index
    %c0_6 = arith.constant 0 : index
    %1 = vector.load %arg5[%c0_3, %c0_4, %c0_5, %c0_6] : memref<1x18x2x128xf32, #tpu.memory_space<vmem>>, vector<1x4x2x128xf32>
    tpu.vector_store %arg5[%c0_3, %c0_4, %c0_5, %c0_6], %0 {strides = array<i32>} : memref<1x18x2x128xf32, #tpu.memory_space<vmem>>, vector<1x4x2x128xf32>,
    %c0_7 = arith.constant 0 : index
    %c0_8 = arith.constant 0 : index
    %c0_9 = arith.constant 0 : index
    %c0_10 = arith.constant 0 : index
    %2 = vector.load %arg3[%c0_7, %c0_8, %c0_9, %c0_10] : memref<1x8x2x128xf32, #tpu.memory_space<vmem>>, vector<1x8x2x128xf32>
    %c0_11 = arith.constant 0 : index
    %c4 = arith.constant 4 : index
    %c0_12 = arith.constant 0 : index
    %c0_13 = arith.constant 0 : index
    %3 = vector.load %arg5[%c0_11, %c4, %c0_12, %c0_13] : memref<1x18x2x128xf32, #tpu.memory_space<vmem>>, vector<1x8x2x128xf32>
    tpu.vector_store %arg5[%c0_11, %c4, %c0_12, %c0_13], %2 {strides = array<i32>} : memref<1x18x2x128xf32, #tpu.memory_space<vmem>>, vector<1x8x2x128xf32>,
    %c0_14 = arith.constant 0 : index
    %c0_15 = arith.constant 0 : index
    %c0_16 = arith.constant 0 : index
    %c0_17 = arith.constant 0 : index
    %4 = vector.load %arg4[%c0_14, %c0_15, %c0_16, %c0_17] : memref<1x6x2x128xf32, #tpu.memory_space<vmem>>, vector<1x6x2x128xf32>
    %c0_18 = arith.constant 0 : index
    %c12 = arith.constant 12 : index
    %c0_19 = arith.constant 0 : index
    %c0_20 = arith.constant 0 : index
    %5 = vector.load %arg5[%c0_18, %c12, %c0_19, %c0_20] : memref<1x18x2x128xf32, #tpu.memory_space<vmem>>, vector<1x6x2x128xf32>
    tpu.vector_store %arg5[%c0_18, %c12, %c0_19, %c0_20], %4 {strides = array<i32>} : memref<1x18x2x128xf32, #tpu.memory_space<vmem>>, vector<1x6x2x128xf32>,
    return
  }
  func.func @transform_0(%arg0: i32, %arg1: i32) -> (i32, i32, i32, i32) {
    %c0_i32 = arith.constant 0 : i32
    %c0_i32_0 = arith.constant 0 : i32
    %c0_i32_1 = arith.constant 0 : i32
    return %arg0, %c0_i32, %arg1, %c0_i32_0 : i32, i32, i32, i32
  }
  func.func @transform_1(%arg0: i32, %arg1: i32) -> (i32, i32, i32, i32) {
    %c0_i32 = arith.constant 0 : i32
    %c0_i32_0 = arith.constant 0 : i32
    %c0_i32_1 = arith.constant 0 : i32
    return %arg0, %c0_i32, %arg1, %c0_i32_0 : i32, i32, i32, i32
  }
  func.func @transform_2(%arg0: i32, %arg1: i32) -> (i32, i32, i32, i32) {
    %c0_i32 = arith.constant 0 : i32
    %c0_i32_0 = arith.constant 0 : i32
    %c0_i32_1 = arith.constant 0 : i32
    return %arg0, %c0_i32, %arg1, %c0_i32_0 : i32, i32, i32, i32
  }
  func.func @transform_3(%arg0: i32, %arg1: i32) -> (i32, i32, i32, i32) {
    %c0_i32 = arith.constant 0 : i32
    %c0_i32_0 = arith.constant 0 : i32
    %c0_i32_1 = arith.constant 0 : i32
    return %arg0, %c0_i32, %arg1, %c0_i32_0 : i32, i32, i32, i32
  }
}

</mosaic_0001>

<llo_original>
// kernel: tpu_custom_call.1
$region0: #{tpu_custom_call.1}
  #allocation0 [shape = 'u32[]', space=smem, size = 0x4, offset = 0x4, fixed_abs, tag = 'smem constant byte address 0x4 - core index']
  #allocation1 [shape = 'u32[144,128]{1,0:T(1,128)}', space=vmem, size = 0x12000, scoped, tag = 'internal scratch']
  %s0 = inlined_call_operand.hbm [shape: f32[2,4,2,128], index: 0, kind: input, shape index: {}]
  %s1 = inlined_call_operand.hbm [shape: f32[2,8,2,128], index: 1, kind: input, shape index: {}]
  %s2 = inlined_call_operand.hbm [shape: f32[2,6,2,128], index: 2, kind: input, shape index: {}]
  %s3 = inlined_call_operand.hbm [shape: f32[2,18,2,128], index: 3, kind: output, shape index: {}]
  %s4 = sld [smem:[#allocation0]]
  $region57: #{tpu_custom_call.1} parent=0
    _
  %s6 = ssub.s32 1, %s4
  %s7 = scalar_select 0, %s6, %s4
  $region1: #{tpu_custom_call.1} parent=0
    #allocation2 [shape = 'u8[8192]{0}', space=vmem, size = 0x2000, scoped, tag = 'input window, operand 0']
    #allocation3 [shape = 's32[2]{0}', space=sflag, size = 0x8, scoped, tag = 'scoped memory for tpu_custom_call.1']
    #allocation4 [shape = 's32[2]{0}', space=sflag, size = 0x8, scoped, tag = 'scoped memory for tpu_custom_call.1']
    #allocation5 [shape = 'u8[16384]{0}', space=vmem, size = 0x4000, scoped, tag = 'input window, operand 1']
    #allocation6 [shape = 's32[2]{0}', space=sflag, size = 0x8, scoped, tag = 'scoped memory for tpu_custom_call.1']
    #allocation7 [shape = 'u8[12288]{0}', space=vmem, size = 0x3000, scoped, tag = 'input window, operand 2']
    #allocation8 [shape = 'u8[36864]{0}', space=vmem, size = 0x9000, scoped, tag = 'output window, operand 0']
    %8 = vsyncpa [#allocation3], 0
    %s9 = scalar_lea.sflag [#allocation3], 1
    %10 = vsyncpa %s9, 0
    %11 = vsyncpa [#allocation6], 0
    %s12 = scalar_lea.sflag [#allocation6], 1
    %13 = vsyncpa %s12, 0
    %14 = vsyncpa [#allocation4], 0
    %s15 = scalar_lea.sflag [#allocation4], 1
    %16 = vsyncpa %s15, 0
    loop: start=0, step=1, limit=4
    $region2: #{tpu_custom_call.1} parent=1 // loop_pre_header
      _
    $region3: #{tpu_custom_call.1} parent=1 // loop_header
      %s18 = sphi 0, %s22
      %p19 = scmp.ge.s32.totalorder %s18, 4
      %s25 = sphi 0, %s37
      %s26 = sphi 0, %s33
      %s27 = sphi 0, %s25
      %s28 = sphi 0, %s26
      %s29 = sphi 0, %s27
      %s30 = sphi 0, %s28
      %s42 = sphi 0, %s44
      %s45 = sphi 0, %s42
      %s46 = sphi 0, %s45
      %s62 = sphi 0, %s46
      %s70 = sphi 0, %s72
      %s73 = sphi 0, %s70
      %s74 = sphi 0, %s73
      %s90 = sphi 0, %s74
      %s98 = sphi 0, %s100
      %s101 = sphi 0, %s98
      %s102 = sphi 0, %s101
      %s118 = sphi 0, %s102
      %s126 = sphi 0, %s128
      %s129 = sphi 0, %s126
      %s130 = sphi 0, %s129
      %s146 = sphi 0, %s130
    $region4: #{tpu_custom_call.1} parent=1 // loop_header_branch
      %21 = sbr.rel (%p19) target = $region8
    $region5: #{tpu_custom_call.1} parent=1 // loop_body
      %s23 = ssub.s32 %s18, 1
      %s24 = ssub.s32 %s18, 2
      %s31 = sadd.s32 1, %s26
      %p32 = scmp.ge.s32.totalorder %s31, 1
      %s33 = scalar_select %p32, 0, %s31
      %s34 = sadd.s32 1, %s25
      %s35 = scalar_select %p32, %s34, %s25
      %p36 = scmp.ge.s32.totalorder %s35, 2
      %s37 = scalar_select %p36, 0, %s35
      %s38 = ssub.s32 %s25, %s37
      %s39 = ssub.s32 %s26, %s33
      %s40 = sor.u32 %s38, %s39
      %p41 = scmp.eq.s32.totalorder %s40, 0
      %s43 = sadd.s32 %s42, 1
      %s44 = scalar_select %p41, %s42, %s43
      %p47 = pneg %p41
      %p48 = scmp.eq.s32.totalorder %s18, 1
      %p49 = por %p47, %p48
      %p50 = scmp.ne.s32.totalorder %s42, %s45
      %p51 = scmp.eq.s32.totalorder %s18, 0
      %p52 = por %p50, %p51
      %p53 = scmp.ne.s32.totalorder %s42, %s45
      %p54 = scmp.eq.s32.totalorder %s23, 1
      %p55 = por %p53, %p54
      %p56 = scmp.ne.s32.totalorder %s45, %s46
      %p57 = scmp.eq.s32.totalorder %s23, 0
      %p58 = por %p56, %p57
      %p59 = scmp.ne.s32.totalorder %s45, %s46
      %p60 = scmp.eq.s32.totalorder %s24, 1
      %p61 = por %p59, %p60
      %p63 = scmp.ne.s32.totalorder %s46, %s62
      %p64 = scmp.eq.s32.totalorder %s24, 0
      %p65 = por %p63, %p64
      %s66 = ssub.s32 %s25, %s37
      %s67 = ssub.s32 %s26, %s33
      %s68 = sor.u32 %s66, %s67
      %p69 = scmp.eq.s32.totalorder %s68, 0
      %s71 = sadd.s32 %s70, 1
      %s72 = scalar_select %p69, %s70, %s71
      %p75 = pneg %p69
      %p76 = scmp.eq.s32.totalorder %s18, 1
      %p77 = por %p75, %p76
      %p78 = scmp.ne.s32.totalorder %s70, %s73
      %p79 = scmp.eq.s32.totalorder %s18, 0
      %p80 = por %p78, %p79
      %p81 = scmp.ne.s32.totalorder %s70, %s73
      %p82 = scmp.eq.s32.totalorder %s23, 1
      %p83 = por %p81, %p82
      %p84 = scmp.ne.s32.totalorder %s73, %s74
      %p85 = scmp.eq.s32.totalorder %s23, 0
      %p86 = por %p84, %p85
      %p87 = scmp.ne.s32.totalorder %s73, %s74
      %p88 = scmp.eq.s32.totalorder %s24, 1
      %p89 = por %p87, %p88
      %p91 = scmp.ne.s32.totalorder %s74, %s90
      %p92 = scmp.eq.s32.totalorder %s24, 0
      %p93 = por %p91, %p92
      %s94 = ssub.s32 %s25, %s37
      %s95 = ssub.s32 %s26, %s33
      %s96 = sor.u32 %s94, %s95
      %p97 = scmp.eq.s32.totalorder %s96, 0
      %s99 = sadd.s32 %s98, 1
      %s100 = scalar_select %p97, %s98, %s99
      %p103 = pneg %p97
      %p104 = scmp.eq.s32.totalorder %s18, 1
      %p105 = por %p103, %p104
      %p106 = scmp.ne.s32.totalorder %s98, %s101
      %p107 = scmp.eq.s32.totalorder %s18, 0
      %p108 = por %p106, %p107
      %p109 = scmp.ne.s32.totalorder %s98, %s101
      %p110 = scmp.eq.s32.totalorder %s23, 1
      %p111 = por %p109, %p110
      %p112 = scmp.ne.s32.totalorder %s101, %s102
      %p113 = scmp.eq.s32.totalorder %s23, 0
      %p114 = por %p112, %p113
      %p115 = scmp.ne.s32.totalorder %s101, %s102
      %p116 = scmp.eq.s32.totalorder %s24, 1
      %p117 = por %p115, %p116
      %p119 = scmp.ne.s32.totalorder %s102, %s118
      %p120 = scmp.eq.s32.totalorder %s24, 0
      %p121 = por %p119, %p120
      %s122 = ssub.s32 %s25, %s37
      %s123 = ssub.s32 %s26, %s33
      %s124 = sor.u32 %s122, %s123
      %p125 = scmp.eq.s32.totalorder %s124, 0
      %s127 = sadd.s32 %s126, 1
      %s128 = scalar_select %p125, %s126, %s127
      %p131 = pneg %p125
      %p132 = scmp.eq.s32.totalorder %s18, 1
      %p133 = por %p131, %p132
      %p134 = scmp.ne.s32.totalorder %s126, %s129
      %p135 = scmp.eq.s32.totalorder %s18, 0
      %p136 = por %p134, %p135
      %p137 = scmp.ne.s32.totalorder %s126, %s129
      %p138 = scmp.eq.s32.totalorder %s23, 1
      %p139 = por %p137, %p138
      %p140 = scmp.ne.s32.totalorder %s129, %s130
      %p141 = scmp.eq.s32.totalorder %s23, 0
      %p142 = por %p140, %p141
      %p143 = scmp.ne.s32.totalorder %s129, %s130
      %p144 = scmp.eq.s32.totalorder %s24, 1
      %p145 = por %p143, %p144
      %p147 = scmp.ne.s32.totalorder %s130, %s146
      %p148 = scmp.eq.s32.totalorder %s24, 0
      %p149 = por %p147, %p148
      %p150 = scmp.le.s32.totalorder 1, %s18
      %p151 = scmp.lt.s32.totalorder %s18, 3
      %p152 = pnand %p150, %p151
      %p153 = pneg %p152
      // Predicated region
      $region9: #{tpu_custom_call.1} parent=5 // pred_check
        _
      $region10: #{tpu_custom_call.1} parent=5 // pred_check_branch
        %155 = sbr.rel (%p152) target = $region12
      $region11: #{tpu_custom_call.1} parent=5 // pred_region
        %s156 = ssub.s32 %s18, 1
      $region12: #{tpu_custom_call.1} parent=5 // pred_fallthru
        _
      %p157 = scmp.lt.s32.totalorder %s18, 2
      // Predicated region
      $region13: #{tpu_custom_call.1} parent=5 // pred_check
        %p158 = pneg %p157
      $region14: #{tpu_custom_call.1} parent=5 // pred_check_branch
        %160 = sbr.rel (%p158) target = $region16
      $region15: #{tpu_custom_call.1} parent=5 // pred_region
        // Predicated region
        $region17: #{tpu_custom_call.1} parent=15 // pred_check
          %p161 = pneg %p52
        $region18: #{tpu_custom_call.1} parent=15 // pred_check_branch
          %163 = sbr.rel (%p161) target = $region20
        $region19: #{tpu_custom_call.1} parent=15 // pred_region
          %s164 = sand.u32 %s42, 1
          %s165 = scalar_lea.sflag [#allocation3], %s164
          %s166 = sand.u32 %s42, 1
          %s167 = smul.addr %s166, 8
          %s168 = scalar_lea.vmem [#allocation2], %s167
          %s170 = ssub.s32 128, 128
          %171 = vsyncadd %s165, %s170
          %s172 = smul.addr %s25, 4
          %s173 = sadd.s32 %s26, %s172
          %s174 = smul.addr %s173, 32
          %s175 = scalar_lea.hbm %s0, %s174
          %s176 = sshll.u32 %s168, 4
          %s177 = int_to_ptr.vmem [resolvable:$true] %s176
          %182 = dma.hbm_to_vmem [thread:$0]  %s175, 128, %s177, %s165, 32, 32, 2
        $region20: #{tpu_custom_call.1} parent=15 // pred_fallthru
          _
        // Predicated region
        $region21: #{tpu_custom_call.1} parent=15 // pred_check
          %p183 = pneg %p80
        $region22: #{tpu_custom_call.1} parent=15 // pred_check_branch
          %185 = sbr.rel (%p183) target = $region24
        $region23: #{tpu_custom_call.1} parent=15 // pred_region
          %s186 = sand.u32 %s18, 1
          %s187 = scalar_lea.sflag [#allocation6], %s186
          %s188 = sand.u32 %s70, 1
          %s189 = smul.addr %s188, 16
          %s190 = scalar_lea.vmem [#allocation5], %s189
          %s192 = ssub.s32 256, 256
          %193 = vsyncadd %s187, %s192
          %s194 = smul.addr %s25, 8
          %s195 = sadd.s32 %s26, %s194
          %s196 = smul.addr %s195, 32
          %s197 = scalar_lea.hbm %s1, %s196
          %s198 = sshll.u32 %s190, 4
          %s199 = int_to_ptr.vmem [resolvable:$true] %s198
          %204 = dma.hbm_to_vmem [thread:$0]  %s197, 256, %s199, %s187, 32, 32, 2
        $region24: #{tpu_custom_call.1} parent=15 // pred_fallthru
          _
        // Predicated region
        $region25: #{tpu_custom_call.1} parent=15 // pred_check
          %p205 = pneg %p108
        $region26: #{tpu_custom_call.1} parent=15 // pred_check_branch
          %207 = sbr.rel (%p205) target = $region28
        $region27: #{tpu_custom_call.1} parent=15 // pred_region
          %s208 = sand.u32 %s18, 1
          %s209 = scalar_lea.sflag [#allocation6], %s208
          %s210 = sand.u32 %s98, 1
          %s211 = smul.addr %s210, 12
          %s212 = scalar_lea.vmem [#allocation7], %s211
          %s214 = ssub.s32 192, 192
          %215 = vsyncadd %s209, %s214
          %s216 = smul.addr %s25, 6
          %s217 = sadd.s32 %s26, %s216
          %s218 = smul.addr %s217, 32
          %s219 = scalar_lea.hbm %s2, %s218
          %s220 = sshll.u32 %s212, 4
          %s221 = int_to_ptr.vmem [resolvable:$true] %s220
          %226 = dma.hbm_to_vmem [thread:$0]  %s219, 192, %s221, %s209, 32, 32, 2
        $region28: #{tpu_custom_call.1} parent=15 // pred_fallthru
          _
      $region16: #{tpu_custom_call.1} parent=5 // pred_fallthru
        _
      %p227 = scmp.le.s32.totalorder 1, %s18
      %p228 = scmp.lt.s32.totalorder %s18, 3
      %p229 = pnand %p227, %p228
      %p230 = pneg %p229
      // Predicated region
      $region29: #{tpu_custom_call.1} parent=5 // pred_check
        _
      $region30: #{tpu_custom_call.1} parent=5 // pred_check_branch
        %232 = sbr.rel (%p229) target = $region32
      $region31: #{tpu_custom_call.1} parent=5 // pred_region
        %s233 = ssub.s32 %s18, 1
        %s234 = sand.u32 %s45, 1
        %s235 = scalar_lea.sflag [#allocation3], %s234
        %s236 = sand.u32 %s45, 1
        %s237 = smul.addr %s236, 8
        %s238 = scalar_lea.vmem [#allocation2], %s237
        // Predicated region
        $region33: #{tpu_custom_call.1} parent=31 // pred_check
          %p239 = pneg %p58
        $region34: #{tpu_custom_call.1} parent=31 // pred_check_branch
          %241 = sbr.rel (%p239) target = $region36
        $region35: #{tpu_custom_call.1} parent=31 // pred_region
          %242 = dma.done %s235, 128
        $region36: #{tpu_custom_call.1} parent=31 // pred_fallthru
          _
        %s243 = sand.u32 %s23, 1
        %s244 = scalar_lea.sflag [#allocation6], %s243
        %s245 = sand.u32 %s73, 1
        %s246 = smul.addr %s245, 16
        %s247 = scalar_lea.vmem [#allocation5], %s246
        // Predicated region
        $region37: #{tpu_custom_call.1} parent=31 // pred_check
          %p248 = pneg %p86
        $region38: #{tpu_custom_call.1} parent=31 // pred_check_branch
          %250 = sbr.rel (%p248) target = $region40
        $region39: #{tpu_custom_call.1} parent=31 // pred_region
          %251 = dma.done %s244, 256
        $region40: #{tpu_custom_call.1} parent=31 // pred_fallthru
          _
        %s252 = sand.u32 %s23, 1
        %s253 = scalar_lea.sflag [#allocation6], %s252
        %s254 = sand.u32 %s101, 1
        %s255 = smul.addr %s254, 12
        %s256 = scalar_lea.vmem [#allocation7], %s255
        // Predicated region
        $region41: #{tpu_custom_call.1} parent=31 // pred_check
          %p257 = pneg %p114
        $region42: #{tpu_custom_call.1} parent=31 // pred_check_branch
          %259 = sbr.rel (%p257) target = $region44
        $region43: #{tpu_custom_call.1} parent=31 // pred_region
          %260 = dma.done %s253, 192
        $region44: #{tpu_custom_call.1} parent=31 // pred_fallthru
          _
        %s261 = sand.u32 %s45, 1
        %s262 = scalar_lea.sflag [#allocation3], %s261
        %s263 = sand.u32 %s45, 1
        %s264 = smul.addr %s263, 8
        %s265 = scalar_lea.vmem [#allocation2], %s264
        %p266 = pneg %p58
        %p267 = pneg %p55
        %s268 = sand.u32 %s23, 1
        %s269 = scalar_lea.sflag [#allocation6], %s268
        %s270 = sand.u32 %s73, 1
        %s271 = smul.addr %s270, 16
        %s272 = scalar_lea.vmem [#allocation5], %s271
        %p273 = pneg %p86
        %p274 = pneg %p83
        %s275 = sand.u32 %s23, 1
        %s276 = scalar_lea.sflag [#allocation6], %s275
        %s277 = sand.u32 %s101, 1
        %s278 = smul.addr %s277, 12
        %s279 = scalar_lea.vmem [#allocation7], %s278
        %p280 = pneg %p114
        %p281 = pneg %p111
        %p282 = pneg %p142
        %p283 = pneg %p139
        %s284 = sand.u32 %s129, 1
        %s285 = scalar_lea.sflag [#allocation4], %s284
        %s286 = sand.u32 %s129, 1
        %s287 = smul.addr %s286, 36
        %s288 = scalar_lea.vmem [#allocation8], %s287
        %v289 = vld [vmem:[%s238] sm:$0x3]
        %v290 = vld [vmem:[%s238 + $0x2] sm:$0x3]
        %v291 = vld [vmem:[%s238 + $0x4] sm:$0x3]
        %v292 = vld [vmem:[%s238 + $0x6] sm:$0x3]
        %293 = vst [vmem:[%s288] sm:$0x3] %v289
        %294 = vst [vmem:[%s288 + $0x2] sm:$0x3] %v290
        %295 = vst [vmem:[%s288 + $0x4] sm:$0x3] %v291
        %296 = vst [vmem:[%s288 + $0x6] sm:$0x3] %v292
        %v297 = vld [vmem:[%s247] sm:$0x3]
        %v298 = vld [vmem:[%s247 + $0x2] sm:$0x3]
        %v299 = vld [vmem:[%s247 + $0x4] sm:$0x3]
        %v300 = vld [vmem:[%s247 + $0x6] sm:$0x3]
        %v301 = vld [vmem:[%s247 + $0x8] sm:$0x3]
        %v302 = vld [vmem:[%s247 + $0xa] sm:$0x3]
        %v303 = vld [vmem:[%s247 + $0xc] sm:$0x3]
        %v304 = vld [vmem:[%s247 + $0xe] sm:$0x3]
        %s305 = scalar_lea.vmem %s288, 8 [#allocation8]
        %306 = vst [vmem:[%s305] sm:$0x3] %v297
        %307 = vst [vmem:[%s305 + $0x2] sm:$0x3] %v298
        %308 = vst [vmem:[%s305 + $0x4] sm:$0x3] %v299
        %309 = vst [vmem:[%s305 + $0x6] sm:$0x3] %v300
        %310 = vst [vmem:[%s305 + $0x8] sm:$0x3] %v301
        %311 = vst [vmem:[%s305 + $0xa] sm:$0x3] %v302
        %312 = vst [vmem:[%s305 + $0xc] sm:$0x3] %v303
        %313 = vst [vmem:[%s305 + $0xe] sm:$0x3] %v304
        %v314 = vld [vmem:[%s256] sm:$0x3]
        %v315 = vld [vmem:[%s256 + $0x2] sm:$0x3]
        %v316 = vld [vmem:[%s256 + $0x4] sm:$0x3]
        %v317 = vld [vmem:[%s256 + $0x6] sm:$0x3]
        %v318 = vld [vmem:[%s256 + $0x8] sm:$0x3]
        %v319 = vld [vmem:[%s256 + $0xa] sm:$0x3]
        %s320 = scalar_lea.vmem %s288, 24 [#allocation8]
        %321 = vst [vmem:[%s320] sm:$0x3] %v314
        %322 = vst [vmem:[%s320 + $0x2] sm:$0x3] %v315
        %323 = vst [vmem:[%s320 + $0x4] sm:$0x3] %v316
        %324 = vst [vmem:[%s320 + $0x6] sm:$0x3] %v317
        %325 = vst [vmem:[%s320 + $0x8] sm:$0x3] %v318
        %326 = vst [vmem:[%s320 + $0xa] sm:$0x3] %v319
        %s327 = sand.u32 %s129, 1
        %s328 = scalar_lea.sflag [#allocation4], %s327
        %s329 = sand.u32 %s129, 1
        %s330 = smul.addr %s329, 36
        %s331 = scalar_lea.vmem [#allocation8], %s330
        // Predicated region
        $region45: #{tpu_custom_call.1} parent=31 // pred_check
          %p332 = pneg %p139
        $region46: #{tpu_custom_call.1} parent=31 // pred_check_branch
          %334 = sbr.rel (%p332) target = $region48
        $region47: #{tpu_custom_call.1} parent=31 // pred_region
          %s336 = ssub.s32 576, 576
          %337 = vsyncadd %s328, %s336
          %s338 = smul.addr %s27, 18
          %s339 = sadd.s32 %s28, %s338
          %s340 = smul.addr %s339, 32
          %s341 = scalar_lea.hbm %s3, %s340
          %s342 = sshll.u32 %s331, 4
          %s343 = int_to_ptr.vmem [resolvable:$true] %s342
          %348 = dma.vmem_to_hbm [thread:$0]  %s343, 576, %s341, %s328, 32, 32, 2
        $region48: #{tpu_custom_call.1} parent=31 // pred_fallthru
          _
      $region32: #{tpu_custom_call.1} parent=5 // pred_fallthru
        _
      %p349 = scmp.le.s32.totalorder 2, %s18
      // Predicated region
      $region49: #{tpu_custom_call.1} parent=5 // pred_check
        %p350 = pneg %p349
      $region50: #{tpu_custom_call.1} parent=5 // pred_check_branch
        %352 = sbr.rel (%p350) target = $region52
      $region51: #{tpu_custom_call.1} parent=5 // pred_region
        %s353 = ssub.s32 %s18, 2
        // Predicated region
        $region53: #{tpu_custom_call.1} parent=51 // pred_check
          %p354 = pneg %p145
        $region54: #{tpu_custom_call.1} parent=51 // pred_check_branch
          %356 = sbr.rel (%p354) target = $region56
        $region55: #{tpu_custom_call.1} parent=51 // pred_region
          %s357 = sand.u32 %s130, 1
          %s358 = scalar_lea.sflag [#allocation4], %s357
          %s359 = sand.u32 %s130, 1
          %s360 = smul.addr %s359, 36
          %s361 = scalar_lea.vmem [#allocation8], %s360
          %362 = dma.done %s358, 576
        $region56: #{tpu_custom_call.1} parent=51 // pred_fallthru
          _
      $region52: #{tpu_custom_call.1} parent=5 // pred_fallthru
        _
    $region6: #{tpu_custom_call.1} parent=1 // loop_footer
      %s22 = sadd.s32 1, %s18
    $region7: #{tpu_custom_call.1} parent=1 // loop_footer_branch
      %17 = sbr.rel target = $region3
    $region8: #{tpu_custom_call.1} parent=1 // loop_exit
      _
    %363 = vsyncpa [#allocation3], 1
    %s364 = scalar_lea.sflag [#allocation3], 1
    %365 = vsyncpa %s364, 1
    %366 = vsyncpa [#allocation6], 1
    %s367 = scalar_lea.sflag [#allocation6], 1
    %368 = vsyncpa %s367, 1
    %369 = vsyncpa [#allocation4], 1
    %s370 = scalar_lea.sflag [#allocation4], 1
    %371 = vsyncpa %s370, 1

</llo_original>
